<compile_context>
chip_gen: v5e
topology: v5e:2x2
jax: 0.10.0
libtpu: 0.0.40
codegen_flags: <defaults>
</compile_context>

<pallas_src>
import jax
import jax.numpy as jnp
from jax.experimental import pallas as pl
from jax.experimental.pallas import tpu as pltpu

_LANES = 128     # vreg lane width
_SUBLANES = 8    # vreg sublane count (f32)


def _masked_mse_partial_kernel(pred_ref, target_ref, mask_ref, sse_ref, msk_ref):
    """Accumulate per-core (8, 128) partial sums of squared error and mask."""
    i = pl.program_id(1)  # reduction ("arbitrary") axis

    @pl.when(i == 0)
    def _():
        sse_ref[...] = jnp.zeros_like(sse_ref)
        msk_ref[...] = jnp.zeros_like(msk_ref)

    p = pred_ref[...].astype(jnp.float32)
    t = target_ref[...].astype(jnp.float32)
    m = mask_ref[...].astype(jnp.float32)

    diff = p * m - t
    r, w = diff.shape
    # Fold the (tile_rows, 128) tile into (tile_rows//8, 8, 128) and sum the
    # leading axis: pure VPU vreg adds, no per-step XLU reduce, no scalar path.
    sse_ref[...] += jnp.sum(
        (diff * diff).reshape(r // _SUBLANES, _SUBLANES, w), axis=0)[None]
    msk_ref[...] += jnp.sum(
        m.reshape(r // _SUBLANES, _SUBLANES, w), axis=0)[None]


def _cdiv(a, b):
    return (a + b - 1) // b


def _round_up(x, n):
    return _cdiv(x, n) * n


def masked_mse_loss(pred, target, mask, *, max_tile_rows=2048, num_splits=2):
    """Returns scalar f32: sum((pred*mask - target)^2) / sum(mask)."""
    assert pred.shape == target.shape == mask.shape
    total = int(pred.size)

    p = pred.reshape(-1)
    t = target.reshape(-1)
    m = mask.reshape(-1)

    rows = _cdiv(total, _LANES)
    rows_per_split = _cdiv(rows, num_splits)
    tile_rows = min(max_tile_rows, _round_up(rows_per_split, _SUBLANES))
    steps = _cdiv(rows_per_split, tile_rows)
    padded_rows = num_splits * steps * tile_rows
    pad = padded_rows * _LANES - total
    if pad:
        # Zero padding is exact: padded elements contribute 0 to both sums.
        p = jnp.pad(p, (0, pad))
        t = jnp.pad(t, (0, pad))
        m = jnp.pad(m, (0, pad))
    p2 = p.reshape(padded_rows, _LANES)
    t2 = t.reshape(padded_rows, _LANES)
    m2 = m.reshape(padded_rows, _LANES)

    in_spec = pl.BlockSpec((tile_rows, _LANES),
                           lambda c, i: (c * steps + i, 0))
    out_spec = pl.BlockSpec((1, _SUBLANES, _LANES), lambda c, i: (c, 0, 0))

    sse_part, msk_part = pl.pallas_call(
        _masked_mse_partial_kernel,
        out_shape=(
            jax.ShapeDtypeStruct((num_splits, _SUBLANES, _LANES), jnp.float32),
            jax.ShapeDtypeStruct((num_splits, _SUBLANES, _LANES), jnp.float32),
        ),
        grid_spec=pltpu.PrefetchScalarGridSpec(
            num_scalar_prefetch=0,
            grid=(num_splits, steps),
            in_specs=[in_spec, in_spec, in_spec],
            out_specs=(out_spec, out_spec),
        ),
        compiler_params=pltpu.CompilerParams(
            dimension_semantics=("parallel", "arbitrary"),
        ),
    )(p2, t2, m2)

    # Tiny final cross-lane reduce + divide (matches PyTorch: no zero-mask guard).
    return jnp.sum(sse_part) / jnp.sum(msk_part)


def masked_mse_loss_ref(pred, target, mask):
    p = pred.astype(jnp.float32)
    t = target.astype(jnp.float32)
    m = mask.astype(jnp.float32)
    return jnp.sum((p * m - t) ** 2) / jnp.sum(m)


if __name__ == "__main__":
    key = jax.random.PRNGKey(0)
    k1, k2, k3 = jax.random.split(key, 3)

    # Shapes consistent with the module's use: (batch, seq, feat) regression
    # targets with a padding mask. Non-128 last dim exercises the pad path.
    B, S, D = 2, 8, 100
    pred = jax.random.normal(k1, (B, S, D), dtype=jnp.float32)
    target = jax.random.normal(k2, (B, S, D), dtype=jnp.float32)
    mask = (jax.random.uniform(k3, (B, S, D)) > 0.3).astype(jnp.float32)

    loss = masked_mse_loss(pred, target, mask)
    jax.block_until_ready(loss)
    ref = masked_mse_loss_ref(pred, target, mask)
    assert jnp.allclose(loss, ref, rtol=1e-5, atol=1e-5), (loss, ref)

    # Lane-dense shape (multiple of (8,128)): no padding, multi-row tiles.
    N2, D2 = 64, 128
    pred2 = jax.random.normal(k1, (N2, D2), dtype=jnp.float32)
    target2 = jax.random.normal(k2, (N2, D2), dtype=jnp.float32)
    mask2 = (jax.random.uniform(k3, (N2, D2)) > 0.3).astype(jnp.float32)
    loss2 = masked_mse_loss(pred2, target2, mask2)
    jax.block_until_ready(loss2)
    ref2 = masked_mse_loss_ref(pred2, target2, mask2)
    assert jnp.allclose(loss2, ref2, rtol=1e-5, atol=1e-5), (loss2, ref2)

    print("KERNEL_OK")
</pallas_src>

<mosaic_0001>
module attributes {stable_mosaic.version = 11 : i64} {
  func.func @_masked_mse_partial_kernel(%arg0: i32, %arg1: i32, %arg2: memref<8x128xf32, #tpu.memory_space<vmem>>, %arg3: memref<8x128xf32, #tpu.memory_space<vmem>>, %arg4: memref<8x128xf32, #tpu.memory_space<vmem>>, %arg5: memref<1x8x128xf32, #tpu.memory_space<vmem>>, %arg6: memref<1x8x128xf32, #tpu.memory_space<vmem>>) attributes {dimension_semantics = [#tpu.dimension_semantics<parallel>, #tpu.dimension_semantics<arbitrary>], iteration_bounds = array<i64: 2, 1>, scalar_prefetch = 0 : i64, scratch_operands = 0 : i64, tpu.core_type = #tpu.core_type<tc>, window_params = [{transform_indices = @transform_0, window_bounds = array<i64: 8, 128>}, {transform_indices = @transform_1, window_bounds = array<i64: 8, 128>}, {transform_indices = @transform_2, window_bounds = array<i64: 8, 128>}, {transform_indices = @transform_3, window_bounds = array<i64: 1, 8, 128>}, {transform_indices = @transform_4, window_bounds = array<i64: 1, 8, 128>}]} {
    %c0_i32 = arith.constant 0 : i32
    %0 = arith.cmpi eq, %arg1, %c0_i32 : i32
    %1 = arith.extui %0 : i1 to i32
    %c0_i32_0 = arith.constant 0 : i32
    %2 = arith.cmpi ne, %1, %c0_i32_0 : i32
    scf.if %2 {
      %cst_19 = arith.constant 0.000000e+00 : f32
      %21 = vector.broadcast %cst_19 : f32 to vector<1x8x128xf32>
      %c0_20 = arith.constant 0 : index
      %c0_21 = arith.constant 0 : index
      %c0_22 = arith.constant 0 : index
      %22 = vector.load %arg5[%c0_20, %c0_21, %c0_22] : memref<1x8x128xf32, #tpu.memory_space<vmem>>, vector<1x8x128xf32>
      tpu.vector_store %arg5[%c0_20, %c0_21, %c0_22], %21 {strides = array<i32>} : memref<1x8x128xf32, #tpu.memory_space<vmem>>, vector<1x8x128xf32>,
      %cst_23 = arith.constant 0.000000e+00 : f32
      %23 = vector.broadcast %cst_23 : f32 to vector<1x8x128xf32>
      %c0_24 = arith.constant 0 : index
      %c0_25 = arith.constant 0 : index
      %c0_26 = arith.constant 0 : index
      %24 = vector.load %arg6[%c0_24, %c0_25, %c0_26] : memref<1x8x128xf32, #tpu.memory_space<vmem>>, vector<1x8x128xf32>
      tpu.vector_store %arg6[%c0_24, %c0_25, %c0_26], %23 {strides = array<i32>} : memref<1x8x128xf32, #tpu.memory_space<vmem>>, vector<1x8x128xf32>,
    } else {
    }
    %c0 = arith.constant 0 : index
    %c0_1 = arith.constant 0 : index
    %3 = vector.load %arg2[%c0, %c0_1] : memref<8x128xf32, #tpu.memory_space<vmem>>, vector<8x128xf32>
    %c0_2 = arith.constant 0 : index
    %c0_3 = arith.constant 0 : index
    %4 = vector.load %arg3[%c0_2, %c0_3] : memref<8x128xf32, #tpu.memory_space<vmem>>, vector<8x128xf32>
    %c0_4 = arith.constant 0 : index
    %c0_5 = arith.constant 0 : index
    %5 = vector.load %arg4[%c0_4, %c0_5] : memref<8x128xf32, #tpu.memory_space<vmem>>, vector<8x128xf32>
    %6 = arith.mulf %3, %5 : vector<8x128xf32>
    %7 = arith.subf %6, %4 : vector<8x128xf32>
    %c0_6 = arith.constant 0 : index
    %c0_7 = arith.constant 0 : index
    %c0_8 = arith.constant 0 : index
    %8 = vector.load %arg5[%c0_6, %c0_7, %c0_8] : memref<1x8x128xf32, #tpu.memory_space<vmem>>, vector<1x8x128xf32>
    %9 = arith.mulf %7, %7 : vector<8x128xf32>
    %10 = vector.shape_cast %9 : vector<8x128xf32> to vector<1x8x128xf32>
    %cst = arith.constant dense<0.000000e+00> : vector<8x128xf32>
    %11 = vector.multi_reduction <add>, %10, %cst [0] : vector<1x8x128xf32> to vector<8x128xf32>
    %12 = vector.shape_cast %11 : vector<8x128xf32> to vector<1x8x128xf32>
    %13 = arith.addf %8, %12 : vector<1x8x128xf32>
    %c0_9 = arith.constant 0 : index
    %c0_10 = arith.constant 0 : index
    %c0_11 = arith.constant 0 : index
    %14 = vector.load %arg5[%c0_9, %c0_10, %c0_11] : memref<1x8x128xf32, #tpu.memory_space<vmem>>, vector<1x8x128xf32>
    tpu.vector_store %arg5[%c0_9, %c0_10, %c0_11], %13 {strides = array<i32>} : memref<1x8x128xf32, #tpu.memory_space<vmem>>, vector<1x8x128xf32>,
    %c0_12 = arith.constant 0 : index
    %c0_13 = arith.constant 0 : index
    %c0_14 = arith.constant 0 : index
    %15 = vector.load %arg6[%c0_12, %c0_13, %c0_14] : memref<1x8x128xf32, #tpu.memory_space<vmem>>, vector<1x8x128xf32>
    %16 = vector.shape_cast %5 : vector<8x128xf32> to vector<1x8x128xf32>
    %cst_15 = arith.constant dense<0.000000e+00> : vector<8x128xf32>
    %17 = vector.multi_reduction <add>, %16, %cst_15 [0] : vector<1x8x128xf32> to vector<8x128xf32>
    %18 = vector.shape_cast %17 : vector<8x128xf32> to vector<1x8x128xf32>
    %19 = arith.addf %15, %18 : vector<1x8x128xf32>
    %c0_16 = arith.constant 0 : index
    %c0_17 = arith.constant 0 : index
    %c0_18 = arith.constant 0 : index
    %20 = vector.load %arg6[%c0_16, %c0_17, %c0_18] : memref<1x8x128xf32, #tpu.memory_space<vmem>>, vector<1x8x128xf32>
    tpu.vector_store %arg6[%c0_16, %c0_17, %c0_18], %19 {strides = array<i32>} : memref<1x8x128xf32, #tpu.memory_space<vmem>>, vector<1x8x128xf32>,
    return
  }
  func.func @transform_0(%arg0: i32, %arg1: i32) -> (i32, i32) {
    %c1_i32 = arith.constant 1 : i32
    %0 = arith.muli %arg0, %c1_i32 : i32
    %1 = arith.addi %0, %arg1 : i32
    %c0_i32 = arith.constant 0 : i32
    %c0_i32_0 = arith.constant 0 : i32
    return %1, %c0_i32 : i32, i32
  }
  func.func @transform_1(%arg0: i32, %arg1: i32) -> (i32, i32) {
    %c1_i32 = arith.constant 1 : i32
    %0 = arith.muli %arg0, %c1_i32 : i32
    %1 = arith.addi %0, %arg1 : i32
    %c0_i32 = arith.constant 0 : i32
    %c0_i32_0 = arith.constant 0 : i32
    return %1, %c0_i32 : i32, i32
  }
  func.func @transform_2(%arg0: i32, %arg1: i32) -> (i32, i32) {
    %c1_i32 = arith.constant 1 : i32
    %0 = arith.muli %arg0, %c1_i32 : i32
    %1 = arith.addi %0, %arg1 : i32
    %c0_i32 = arith.constant 0 : i32
    %c0_i32_0 = arith.constant 0 : i32
    return %1, %c0_i32 : i32, i32
  }
  func.func @transform_3(%arg0: i32, %arg1: i32) -> (i32, i32, i32) {
    %c0_i32 = arith.constant 0 : i32
    %c0_i32_0 = arith.constant 0 : i32
    %c0_i32_1 = arith.constant 0 : i32
    return %arg0, %c0_i32, %c0_i32_0 : i32, i32, i32
  }
  func.func @transform_4(%arg0: i32, %arg1: i32) -> (i32, i32, i32) {
    %c0_i32 = arith.constant 0 : i32
    %c0_i32_0 = arith.constant 0 : i32
    %c0_i32_1 = arith.constant 0 : i32
    return %arg0, %c0_i32, %c0_i32_0 : i32, i32, i32
  }
}

</mosaic_0001>

<llo_original>
// kernel: tpu_custom_call.1
$region0: #{tpu_custom_call.1}
  #allocation0 [shape = 'u32[]', space=smem, size = 0x4, offset = 0x4, fixed_abs, tag = 'smem constant byte address 0x4 - core index']
  #allocation1 [shape = 'u32[72,128]{1,0:T(1,128)}', space=vmem, size = 0x9000, scoped, tag = 'internal scratch']
  %s0 = inlined_call_operand.hbm [shape: f32[16,128], index: 0, kind: input, shape index: {}]
  %s1 = inlined_call_operand.hbm [shape: f32[16,128], index: 1, kind: input, shape index: {}]
  %s2 = inlined_call_operand.hbm [shape: f32[16,128], index: 2, kind: input, shape index: {}]
  %s3 = inlined_call_operand.hbm [shape: f32[2,8,128], index: 3, kind: output, shape index: {0}]
  %s4 = inlined_call_operand.hbm [shape: f32[2,8,128], index: 4, kind: output, shape index: {1}]
  %5 = xla_tuple %s3, %s4
  %s6 = sld [smem:[#allocation0]]
  $region69: #{tpu_custom_call.1} parent=0
    _
  %s8 = ssub.s32 1, %s6
  %s9 = scalar_select 0, %s8, %s6
  $region1: #{tpu_custom_call.1} parent=0
    #allocation2 [shape = 'u8[8192]{0}', space=vmem, size = 0x2000, scoped, tag = 'input window, operand 0']
    #allocation3 [shape = 's32[2]{0}', space=sflag, size = 0x8, scoped, tag = 'scoped memory for tpu_custom_call.1']
    #allocation4 [shape = 's32[2]{0}', space=sflag, size = 0x8, scoped, tag = 'scoped memory for tpu_custom_call.1']
    #allocation5 [shape = 'u8[8192]{0}', space=vmem, size = 0x2000, scoped, tag = 'input window, operand 1']
    #allocation6 [shape = 's32[2]{0}', space=sflag, size = 0x8, scoped, tag = 'scoped memory for tpu_custom_call.1']
    #allocation7 [shape = 'u8[8192]{0}', space=vmem, size = 0x2000, scoped, tag = 'input window, operand 2']
    #allocation8 [shape = 'u8[8192]{0}', space=vmem, size = 0x2000, scoped, tag = 'output window, operand 0']
    #allocation9 [shape = 'u8[8192]{0}', space=vmem, size = 0x2000, scoped, tag = 'output window, operand 1']
    #allocation10 [shape = 's32[2]{0}', space=sflag, size = 0x8, scoped, tag = 'scoped memory for tpu_custom_call.1']
    %10 = vsyncpa [#allocation3], 0
    %s11 = scalar_lea.sflag [#allocation3], 1
    %12 = vsyncpa %s11, 0
    %13 = vsyncpa [#allocation6], 0
    %s14 = scalar_lea.sflag [#allocation6], 1
    %15 = vsyncpa %s14, 0
    %16 = vsyncpa [#allocation4], 0
    %s17 = scalar_lea.sflag [#allocation4], 1
    %18 = vsyncpa %s17, 0
    %19 = vsyncpa [#allocation10], 0
    %s20 = scalar_lea.sflag [#allocation10], 1
    %21 = vsyncpa %s20, 0
    loop: start=0, step=1, limit=4
    $region2: #{tpu_custom_call.1} parent=1 // loop_pre_header
      _
    $region3: #{tpu_custom_call.1} parent=1 // loop_header
      %s23 = sphi 0, %s27
      %p24 = scmp.ge.s32.totalorder %s23, 4
      %s30 = sphi 0, %s42
      %s31 = sphi 0, %s38
      %s32 = sphi 0, %s30
      %s33 = sphi 0, %s31
      %s34 = sphi 0, %s32
      %s35 = sphi 0, %s33
      %s47 = sphi 0, %s49
      %s50 = sphi 0, %s47
      %s51 = sphi 0, %s50
      %s67 = sphi 0, %s51
      %s75 = sphi 0, %s77
      %s78 = sphi 0, %s75
      %s79 = sphi 0, %s78
      %s95 = sphi 0, %s79
      %s103 = sphi 0, %s105
      %s106 = sphi 0, %s103
      %s107 = sphi 0, %s106
      %s123 = sphi 0, %s107
      %s129 = sphi 0, %s131
      %s132 = sphi 0, %s129
      %s133 = sphi 0, %s132
      %s149 = sphi 0, %s133
      %s155 = sphi 0, %s157
      %s158 = sphi 0, %s155
      %s159 = sphi 0, %s158
      %s175 = sphi 0, %s159
    $region4: #{tpu_custom_call.1} parent=1 // loop_header_branch
      %26 = sbr.rel (%p24) target = $region8
    $region5: #{tpu_custom_call.1} parent=1 // loop_body
      %s28 = ssub.s32 %s23, 1
      %s29 = ssub.s32 %s23, 2
      %s36 = sadd.s32 1, %s31
      %p37 = scmp.ge.s32.totalorder %s36, 1
      %s38 = scalar_select %p37, 0, %s36
      %s39 = sadd.s32 1, %s30
      %s40 = scalar_select %p37, %s39, %s30
      %p41 = scmp.ge.s32.totalorder %s40, 2
      %s42 = scalar_select %p41, 0, %s40
      %s43 = sadd.s32 %s30, %s31
      %s44 = sadd.s32 %s42, %s38
      %s45 = ssub.s32 %s43, %s44
      %p46 = scmp.eq.s32.totalorder %s45, 0
      %s48 = sadd.s32 %s47, 1
      %s49 = scalar_select %p46, %s47, %s48
      %p52 = pneg %p46
      %p53 = scmp.eq.s32.totalorder %s23, 1
      %p54 = por %p52, %p53
      %p55 = scmp.ne.s32.totalorder %s47, %s50
      %p56 = scmp.eq.s32.totalorder %s23, 0
      %p57 = por %p55, %p56
      %p58 = scmp.ne.s32.totalorder %s47, %s50
      %p59 = scmp.eq.s32.totalorder %s28, 1
      %p60 = por %p58, %p59
      %p61 = scmp.ne.s32.totalorder %s50, %s51
      %p62 = scmp.eq.s32.totalorder %s28, 0
      %p63 = por %p61, %p62
      %p64 = scmp.ne.s32.totalorder %s50, %s51
      %p65 = scmp.eq.s32.totalorder %s29, 1
      %p66 = por %p64, %p65
      %p68 = scmp.ne.s32.totalorder %s51, %s67
      %p69 = scmp.eq.s32.totalorder %s29, 0
      %p70 = por %p68, %p69
      %s71 = sadd.s32 %s30, %s31
      %s72 = sadd.s32 %s42, %s38
      %s73 = ssub.s32 %s71, %s72
      %p74 = scmp.eq.s32.totalorder %s73, 0
      %s76 = sadd.s32 %s75, 1
      %s77 = scalar_select %p74, %s75, %s76
      %p80 = pneg %p74
      %p81 = scmp.eq.s32.totalorder %s23, 1
      %p82 = por %p80, %p81
      %p83 = scmp.ne.s32.totalorder %s75, %s78
      %p84 = scmp.eq.s32.totalorder %s23, 0
      %p85 = por %p83, %p84
      %p86 = scmp.ne.s32.totalorder %s75, %s78
      %p87 = scmp.eq.s32.totalorder %s28, 1
      %p88 = por %p86, %p87
      %p89 = scmp.ne.s32.totalorder %s78, %s79
      %p90 = scmp.eq.s32.totalorder %s28, 0
      %p91 = por %p89, %p90
      %p92 = scmp.ne.s32.totalorder %s78, %s79
      %p93 = scmp.eq.s32.totalorder %s29, 1
      %p94 = por %p92, %p93
      %p96 = scmp.ne.s32.totalorder %s79, %s95
      %p97 = scmp.eq.s32.totalorder %s29, 0
      %p98 = por %p96, %p97
      %s99 = sadd.s32 %s30, %s31
      %s100 = sadd.s32 %s42, %s38
      %s101 = ssub.s32 %s99, %s100
      %p102 = scmp.eq.s32.totalorder %s101, 0
      %s104 = sadd.s32 %s103, 1
      %s105 = scalar_select %p102, %s103, %s104
      %p108 = pneg %p102
      %p109 = scmp.eq.s32.totalorder %s23, 1
      %p110 = por %p108, %p109
      %p111 = scmp.ne.s32.totalorder %s103, %s106
      %p112 = scmp.eq.s32.totalorder %s23, 0
      %p113 = por %p111, %p112
      %p114 = scmp.ne.s32.totalorder %s103, %s106
      %p115 = scmp.eq.s32.totalorder %s28, 1
      %p116 = por %p114, %p115
      %p117 = scmp.ne.s32.totalorder %s106, %s107
      %p118 = scmp.eq.s32.totalorder %s28, 0
      %p119 = por %p117, %p118
      %p120 = scmp.ne.s32.totalorder %s106, %s107
      %p121 = scmp.eq.s32.totalorder %s29, 1
      %p122 = por %p120, %p121
      %p124 = scmp.ne.s32.totalorder %s107, %s123
      %p125 = scmp.eq.s32.totalorder %s29, 0
      %p126 = por %p124, %p125
      %s127 = ssub.s32 %s30, %s42
      %p128 = scmp.eq.s32.totalorder %s127, 0
      %s130 = sadd.s32 %s129, 1
      %s131 = scalar_select %p128, %s129, %s130
      %p134 = pneg %p128
      %p135 = scmp.eq.s32.totalorder %s23, 1
      %p136 = por %p134, %p135
      %p137 = scmp.ne.s32.totalorder %s129, %s132
      %p138 = scmp.eq.s32.totalorder %s23, 0
      %p139 = por %p137, %p138
      %p140 = scmp.ne.s32.totalorder %s129, %s132
      %p141 = scmp.eq.s32.totalorder %s28, 1
      %p142 = por %p140, %p141
      %p143 = scmp.ne.s32.totalorder %s132, %s133
      %p144 = scmp.eq.s32.totalorder %s28, 0
      %p145 = por %p143, %p144
      %p146 = scmp.ne.s32.totalorder %s132, %s133
      %p147 = scmp.eq.s32.totalorder %s29, 1
      %p148 = por %p146, %p147
      %p150 = scmp.ne.s32.totalorder %s133, %s149
      %p151 = scmp.eq.s32.totalorder %s29, 0
      %p152 = por %p150, %p151
      %s153 = ssub.s32 %s30, %s42
      %p154 = scmp.eq.s32.totalorder %s153, 0
      %s156 = sadd.s32 %s155, 1
      %s157 = scalar_select %p154, %s155, %s156
      %p160 = pneg %p154
      %p161 = scmp.eq.s32.totalorder %s23, 1
      %p162 = por %p160, %p161
      %p163 = scmp.ne.s32.totalorder %s155, %s158
      %p164 = scmp.eq.s32.totalorder %s23, 0
      %p165 = por %p163, %p164
      %p166 = scmp.ne.s32.totalorder %s155, %s158
      %p167 = scmp.eq.s32.totalorder %s28, 1
      %p168 = por %p166, %p167
      %p169 = scmp.ne.s32.totalorder %s158, %s159
      %p170 = scmp.eq.s32.totalorder %s28, 0
      %p171 = por %p169, %p170
      %p172 = scmp.ne.s32.totalorder %s158, %s159
      %p173 = scmp.eq.s32.totalorder %s29, 1
      %p174 = por %p172, %p173
      %p176 = scmp.ne.s32.totalorder %s159, %s175
      %p177 = scmp.eq.s32.totalorder %s29, 0
      %p178 = por %p176, %p177
      %p179 = scmp.le.s32.totalorder 1, %s23
      %p180 = scmp.lt.s32.totalorder %s23, 3
      %p181 = pnand %p179, %p180
      %p182 = pneg %p181
      // Predicated region
      $region9: #{tpu_custom_call.1} parent=5 // pred_check
        _
      $region10: #{tpu_custom_call.1} parent=5 // pred_check_branch
        %184 = sbr.rel (%p181) target = $region12
      $region11: #{tpu_custom_call.1} parent=5 // pred_region
        %s185 = ssub.s32 %s23, 1
      $region12: #{tpu_custom_call.1} parent=5 // pred_fallthru
        _
      %p186 = scmp.lt.s32.totalorder %s23, 2
      // Predicated region
      $region13: #{tpu_custom_call.1} parent=5 // pred_check
        %p187 = pneg %p186
      $region14: #{tpu_custom_call.1} parent=5 // pred_check_branch
        %189 = sbr.rel (%p187) target = $region16
      $region15: #{tpu_custom_call.1} parent=5 // pred_region
        // Predicated region
        $region17: #{tpu_custom_call.1} parent=15 // pred_check
          %p190 = pneg %p57
        $region18: #{tpu_custom_call.1} parent=15 // pred_check_branch
          %192 = sbr.rel (%p190) target = $region20
        $region19: #{tpu_custom_call.1} parent=15 // pred_region
          %s193 = sand.u32 %s47, 1
          %s194 = scalar_lea.sflag [#allocation3], %s193
          %s195 = sand.u32 %s47, 1
          %s196 = smul.addr %s195, 8
          %s197 = scalar_lea.vmem [#allocation2], %s196
          %s198 = sadd.s32 %s30, %s31
          %200 = vsyncadd %s194, 0
          %s201 = smul.addr %s198, 8
          %s202 = scalar_lea.hbm %s0, %s201
          %s204 = sshll.u32 %s202, 4
          %s205 = int_to_ptr.hbm [resolvable:$true] %s204
          %s206 = sshll.u32 %s197, 4
          %s207 = int_to_ptr.vmem [resolvable:$true] %s206
          %209 = dma.hbm_to_vmem [thread:$0]  %s205, 128, %s207, %s194
        $region20: #{tpu_custom_call.1} parent=15 // pred_fallthru
          _
        // Predicated region
        $region21: #{tpu_custom_call.1} parent=15 // pred_check
          %p210 = pneg %p85
        $region22: #{tpu_custom_call.1} parent=15 // pred_check_branch
          %212 = sbr.rel (%p210) target = $region24
        $region23: #{tpu_custom_call.1} parent=15 // pred_region
          %s213 = sand.u32 %s23, 1
          %s214 = scalar_lea.sflag [#allocation6], %s213
          %s215 = sand.u32 %s75, 1
          %s216 = smul.addr %s215, 8
          %s217 = scalar_lea.vmem [#allocation5], %s216
          %s218 = sadd.s32 %s30, %s31
          %220 = vsyncadd %s214, 0
          %s221 = smul.addr %s218, 8
          %s222 = scalar_lea.hbm %s1, %s221
          %s224 = sshll.u32 %s222, 4
          %s225 = int_to_ptr.hbm [resolvable:$true] %s224
          %s226 = sshll.u32 %s217, 4
          %s227 = int_to_ptr.vmem [resolvable:$true] %s226
          %229 = dma.hbm_to_vmem [thread:$0]  %s225, 128, %s227, %s214
        $region24: #{tpu_custom_call.1} parent=15 // pred_fallthru
          _
        // Predicated region
        $region25: #{tpu_custom_call.1} parent=15 // pred_check
          %p230 = pneg %p113
        $region26: #{tpu_custom_call.1} parent=15 // pred_check_branch
          %232 = sbr.rel (%p230) target = $region28
        $region27: #{tpu_custom_call.1} parent=15 // pred_region
          %s233 = sand.u32 %s23, 1
          %s234 = scalar_lea.sflag [#allocation6], %s233
          %s235 = sand.u32 %s103, 1
          %s236 = smul.addr %s235, 8
          %s237 = scalar_lea.vmem [#allocation7], %s236
          %s238 = sadd.s32 %s30, %s31
          %240 = vsyncadd %s234, 0
          %s241 = smul.addr %s238, 8
          %s242 = scalar_lea.hbm %s2, %s241
          %s244 = sshll.u32 %s242, 4
          %s245 = int_to_ptr.hbm [resolvable:$true] %s244
          %s246 = sshll.u32 %s237, 4
          %s247 = int_to_ptr.vmem [resolvable:$true] %s246
          %249 = dma.hbm_to_vmem [thread:$0]  %s245, 128, %s247, %s234
        $region28: #{tpu_custom_call.1} parent=15 // pred_fallthru
          _
      $region16: #{tpu_custom_call.1} parent=5 // pred_fallthru
        _
      %p250 = scmp.le.s32.totalorder 1, %s23
      %p251 = scmp.lt.s32.totalorder %s23, 3
      %p252 = pnand %p250, %p251
      %p253 = pneg %p252
      // Predicated region
      $region29: #{tpu_custom_call.1} parent=5 // pred_check
        _
      $region30: #{tpu_custom_call.1} parent=5 // pred_check_branch
        %255 = sbr.rel (%p252) target = $region32
      $region31: #{tpu_custom_call.1} parent=5 // pred_region
        %s256 = ssub.s32 %s23, 1
        %s257 = sand.u32 %s50, 1
        %s258 = scalar_lea.sflag [#allocation3], %s257
        %s259 = sand.u32 %s50, 1
        %s260 = smul.addr %s259, 8
        %s261 = scalar_lea.vmem [#allocation2], %s260
        // Predicated region
        $region33: #{tpu_custom_call.1} parent=31 // pred_check
          %p262 = pneg %p63
        $region34: #{tpu_custom_call.1} parent=31 // pred_check_branch
          %264 = sbr.rel (%p262) target = $region36
        $region35: #{tpu_custom_call.1} parent=31 // pred_region
          %266 = dma.done %s258, 128
        $region36: #{tpu_custom_call.1} parent=31 // pred_fallthru
          _
        %s267 = sand.u32 %s28, 1
        %s268 = scalar_lea.sflag [#allocation6], %s267
        %s269 = sand.u32 %s78, 1
        %s270 = smul.addr %s269, 8
        %s271 = scalar_lea.vmem [#allocation5], %s270
        // Predicated region
        $region37: #{tpu_custom_call.1} parent=31 // pred_check
          %p272 = pneg %p91
        $region38: #{tpu_custom_call.1} parent=31 // pred_check_branch
          %274 = sbr.rel (%p272) target = $region40
        $region39: #{tpu_custom_call.1} parent=31 // pred_region
          %276 = dma.done %s268, 128
        $region40: #{tpu_custom_call.1} parent=31 // pred_fallthru
          _
        %s277 = sand.u32 %s28, 1
        %s278 = scalar_lea.sflag [#allocation6], %s277
        %s279 = sand.u32 %s106, 1
        %s280 = smul.addr %s279, 8
        %s281 = scalar_lea.vmem [#allocation7], %s280
        // Predicated region
        $region41: #{tpu_custom_call.1} parent=31 // pred_check
          %p282 = pneg %p119
        $region42: #{tpu_custom_call.1} parent=31 // pred_check_branch
          %284 = sbr.rel (%p282) target = $region44
        $region43: #{tpu_custom_call.1} parent=31 // pred_region
          %286 = dma.done %s278, 128
        $region44: #{tpu_custom_call.1} parent=31 // pred_fallthru
          _
        %s287 = sand.u32 %s50, 1
        %s288 = scalar_lea.sflag [#allocation3], %s287
        %s289 = sand.u32 %s50, 1
        %s290 = smul.addr %s289, 8
        %s291 = scalar_lea.vmem [#allocation2], %s290
        %p292 = pneg %p63
        %p293 = pneg %p60
        %s294 = sand.u32 %s28, 1
        %s295 = scalar_lea.sflag [#allocation6], %s294
        %s296 = sand.u32 %s78, 1
        %s297 = smul.addr %s296, 8
        %s298 = scalar_lea.vmem [#allocation5], %s297
        %p299 = pneg %p91
        %p300 = pneg %p88
        %s301 = sand.u32 %s28, 1
        %s302 = scalar_lea.sflag [#allocation6], %s301
        %s303 = sand.u32 %s106, 1
        %s304 = smul.addr %s303, 8
        %s305 = scalar_lea.vmem [#allocation7], %s304
        %p306 = pneg %p119
        %p307 = pneg %p116
        %p308 = pneg %p145
        %p309 = pneg %p142
        %s310 = sand.u32 %s132, 1
        %s311 = scalar_lea.sflag [#allocation4], %s310
        %s312 = sand.u32 %s132, 1
        %s313 = smul.addr %s312, 8
        %s314 = scalar_lea.vmem [#allocation8], %s313
        %p315 = pneg %p171
        %p316 = pneg %p168
        %s317 = sand.u32 %s158, 1
        %s318 = scalar_lea.sflag [#allocation10], %s317
        %s319 = sand.u32 %s158, 1
        %s320 = smul.addr %s319, 8
        %s321 = scalar_lea.vmem [#allocation9], %s320
        %s322 = sadd.s32 %s32, %s33
        %s323 = sadd.s32 %s32, %s33
        %s324 = sadd.s32 %s32, %s33
        %p325 = scmp.eq.s32.totalorder %s33, 0
        // Predicated region
        $region45: #{tpu_custom_call.1} parent=31 // pred_check
          %p326 = pneg %p325
        $region46: #{tpu_custom_call.1} parent=31 // pred_check_branch
          %328 = sbr.rel (%p326) target = $region48
        $region47: #{tpu_custom_call.1} parent=31 // pred_region
          %329 = vst [vmem:[%s314] sm:$0xff] 0.0
          %330 = vst [vmem:[%s321] sm:$0xff] 0.0
        $region48: #{tpu_custom_call.1} parent=31 // pred_fallthru
          _
        %v331 = vld [vmem:[%s261] sm:$0xff]
        %v332 = vld [vmem:[%s271] sm:$0xff]
        %v333 = vld [vmem:[%s281] sm:$0xff]
        %v334 = vmul.f32 %v331, %v333
        %v335 = vsub.f32 %v334, %v332
        %v336 = vld [vmem:[%s314] sm:$0xff]
        %v337 = vmul.f32 %v335, %v335
        %v338 = vadd.f32 %v337, 0.0
        %v339 = vadd.f32 %v336, %v338
        %340 = vst [vmem:[%s314] sm:$0xff] %v339
        %v341 = vld [vmem:[%s321] sm:$0xff]
        %v342 = vadd.f32 %v333, 0.0
        %v343 = vadd.f32 %v341, %v342
        %344 = vst [vmem:[%s321] sm:$0xff] %v343
        %s345 = sand.u32 %s132, 1
        %s346 = scalar_lea.sflag [#allocation4], %s345
        %s347 = sand.u32 %s132, 1
        %s348 = smul.addr %s347, 8
        %s349 = scalar_lea.vmem [#allocation8], %s348
        %s350 = sand.u32 %s158, 1
        %s351 = scalar_lea.sflag [#allocation10], %s350
        %s352 = sand.u32 %s158, 1
        %s353 = smul.addr %s352, 8
        %s354 = scalar_lea.vmem [#allocation9], %s353
        // Predicated region
        $region49: #{tpu_custom_call.1} parent=31 // pred_check
          %p355 = pneg %p142
        $region50: #{tpu_custom_call.1} parent=31 // pred_check_branch
          %357 = sbr.rel (%p355) target = $region52
        $region51: #{tpu_custom_call.1} parent=31 // pred_region
          %359 = vsyncadd %s346, 0
          %s360 = smul.addr %s32, 8
          %s361 = scalar_lea.hbm %s3, %s360
          %s363 = sshll.u32 %s349, 4
          %s364 = int_to_ptr.vmem [resolvable:$true] %s363
          %s365 = sshll.u32 %s361, 4
          %s366 = int_to_ptr.hbm [resolvable:$true] %s365
          %368 = dma.vmem_to_hbm [thread:$0]  %s364, 128, %s366, %s346
        $region52: #{tpu_custom_call.1} parent=31 // pred_fallthru
          _
        // Predicated region
        $region53: #{tpu_custom_call.1} parent=31 // pred_check
          %p369 = pneg %p168
        $region54: #{tpu_custom_call.1} parent=31 // pred_check_branch
          %371 = sbr.rel (%p369) target = $region56
        $region55: #{tpu_custom_call.1} parent=31 // pred_region
          %373 = vsyncadd %s351, 0
          %s374 = smul.addr %s32, 8
          %s375 = scalar_lea.hbm %s4, %s374
          %s377 = sshll.u32 %s354, 4
          %s378 = int_to_ptr.vmem [resolvable:$true] %s377
          %s379 = sshll.u32 %s375, 4
          %s380 = int_to_ptr.hbm [resolvable:$true] %s379
          %382 = dma.vmem_to_hbm [thread:$0]  %s378, 128, %s380, %s351
        $region56: #{tpu_custom_call.1} parent=31 // pred_fallthru
          _
      $region32: #{tpu_custom_call.1} parent=5 // pred_fallthru
        _
      %p383 = scmp.le.s32.totalorder 2, %s23
      // Predicated region
      $region57: #{tpu_custom_call.1} parent=5 // pred_check
        %p384 = pneg %p383
      $region58: #{tpu_custom_call.1} parent=5 // pred_check_branch
        %386 = sbr.rel (%p384) target = $region60
      $region59: #{tpu_custom_call.1} parent=5 // pred_region
        %s387 = ssub.s32 %s23, 2
        // Predicated region
        $region61: #{tpu_custom_call.1} parent=59 // pred_check
          %p388 = pneg %p148
        $region62: #{tpu_custom_call.1} parent=59 // pred_check_branch
          %390 = sbr.rel (%p388) target = $region64
        $region63: #{tpu_custom_call.1} parent=59 // pred_region
          %s391 = sand.u32 %s133, 1
          %s392 = scalar_lea.sflag [#allocation4], %s391
          %s393 = sand.u32 %s133, 1
          %s394 = smul.addr %s393, 8
          %s395 = scalar_lea.vmem [#allocation8], %s394
          %397 = dma.done %s392, 128
        $region64: #{tpu_custom_call.1} parent=59 // pred_fallthru
          _
        // Predicated region
        $region65: #{tpu_custom_call.1} parent=59 // pred_check
          %p398 = pneg %p174
        $region66: #{tpu_custom_call.1} parent=59 // pred_check_branch
          %400 = sbr.rel (%p398) target = $region68
        $region67: #{tpu_custom_call.1} parent=59 // pred_region
          %s401 = sand.u32 %s159, 1
          %s402 = scalar_lea.sflag [#allocation10], %s401
          %s403 = sand.u32 %s159, 1
          %s404 = smul.addr %s403, 8
          %s405 = scalar_lea.vmem [#allocation9], %s404
          %407 = dma.done %s402, 128
        $region68: #{tpu_custom_call.1} parent=59 // pred_fallthru
          _
      $region60: #{tpu_custom_call.1} parent=5 // pred_fallthru
        _
    $region6: #{tpu_custom_call.1} parent=1 // loop_footer
      %s27 = sadd.s32 1, %s23
    $region7: #{tpu_custom_call.1} parent=1 // loop_footer_branch
      %22 = sbr.rel target = $region3
    $region8: #{tpu_custom_call.1} parent=1 // loop_exit
      _
    %408 = vsyncpa [#allocation3], 1
    %s409 = scalar_lea.sflag [#allocation3], 1
    %410 = vsyncpa %s409, 1
    %411 = vsyncpa [#allocation6], 1
    %s412 = scalar_lea.sflag [#allocation6], 1
    %413 = vsyncpa %s412, 1
    %414 = vsyncpa [#allocation4], 1
    %s415 = scalar_lea.sflag [#allocation4], 1
    %416 = vsyncpa %s415, 1
    %417 = vsyncpa [#allocation10], 1
    %s418 = scalar_lea.sflag [#allocation10], 1
    %419 = vsyncpa %s418, 1

</llo_original>
